<compile_context>
chip_gen: v6e
topology: v6e:2x2x1
jax: 0.10.0
libtpu: 0.0.40
codegen_flags: <defaults>
</compile_context>

<pallas_src>
import math

import jax
import jax.numpy as jnp
import numpy as np
from jax import lax
from jax.experimental import pallas as pl
from jax.experimental.pallas import tpu as pltpu

DIM = 1          # feature dim of the input vectors
EMB = 16         # embedding_size
FC = 128         # fc_num
LN_EPS = 1e-5


# -----------------------------------------------------------------------------
# Kernel: one grid step processes a slab of TB independent sequences.
# -----------------------------------------------------------------------------
def encoder_kernel(x_ref, qkvp_ref, wrow_ref, fcp_ref, scal_ref, out_ref):
    # SMEM scalars: [W.bias, ln.weight, ln.bias, fc2.bias]
    bw = scal_ref[0]
    ln_b = scal_ref[2]
    b2 = scal_ref[3]
    # (ln.weight is unused: it multiplies an exact 0 in LayerNorm(1).)

    x = x_ref[...]                                   # (TB, N, 1)
    tb, n, _ = x.shape

    # ---- Self_Attention_header ----------------------------------------------
    # Fused Q|K|V projection.  Contraction dim == 1, so this is one VPU
    # broadcast multiply-add against the fused (1, 48) weight row -- no MXU.
    wqkv = qkvp_ref[0:1, :].reshape(1, 1, 3 * EMB)   # leading-dim-only reshape
    bqkv = qkvp_ref[1:2, :].reshape(1, 1, 3 * EMB)
    qkv = x * wqkv + bqkv                            # (TB, N, 3*EMB)
    q = qkv[:, :, 0:EMB]
    k = qkv[:, :, EMB:2 * EMB]
    v = qkv[:, :, 2 * EMB:3 * EMB]

    # Bug-faithful header: only row n-1 is ever written, with the query of
    # row n-1 (the PyTorch reference shadows its outer loop index).
    q_last = q[:, n - 1:n, :]                                            # (TB, 1, EMB)
    scores = jnp.sum(q_last * k, axis=-1, keepdims=True) * (1.0 / math.sqrt(EMB))
    m = jnp.max(scores, axis=1, keepdims=True)                           # (TB, 1, 1)
    e = jnp.exp(scores - m)                                              # (TB, N, 1)
    # softmax denominator via the EUP reciprocal instead of a VALU divide.
    p = e * pl.reciprocal(jnp.sum(e, axis=1, keepdims=True), approx=True)
    val = jnp.sum(p * v, axis=1, keepdims=True)                          # (TB, 1, EMB)

    # ---- Encoder body ---------------------------------------------------------
    # header @ W: the header has one nonzero row, so this is a single
    # (1,EMB).(EMB,) dot per sequence (VPU multiply + lane reduce), added into
    # column n-1 only -- no (N, EMB) header tensor is materialized.
    wrow = wrow_ref[...].reshape(1, 1, EMB)
    val_w = jnp.sum(val * wrow, axis=-1, keepdims=True)                  # (TB, 1, 1)
    col = lax.broadcasted_iota(jnp.int32, (tb, n, 1), 1)
    z = x + bw + jnp.where(col == n - 1, val_w, jnp.float32(0.0))        # (TB, N, 1)

    # First LayerNorm: nn.LayerNorm(1) over a single element is exactly its
    # bias in fp32 (x - mean(x) == 0.0), so LN(z) == ln_b for every token and
    # no mean/var/rsqrt is emitted.  z is therefore value-dead; it is kept
    # (cheap, VPU-only) to mirror the module's dataflow -- Mosaic may fold it.

    # fc: Linear(1,128) -> Sigmoid -> Linear(128,1).  The fc input is the
    # spatially-constant scalar ln_b, so one (1, FC) row covers every token of
    # the slab; both contractions (K=1 and one K=128 row) stay on VPU/EUP.
    w1 = fcp_ref[0:1, :]
    b1 = fcp_ref[1:2, :]
    w2 = fcp_ref[2:3, :]
    h = jax.nn.sigmoid(ln_b * w1 + b1)                                   # (1, FC)
    r = jnp.sum(h * w2, axis=-1, keepdims=True) + b2 + ln_b              # (1, 1)

    # Second LayerNorm(1): again exactly the bias.
    r_ln = jnp.zeros_like(r) + ln_b                                      # (1, 1)

    # Every token of the slab gets the same value; emit it as one lane-dense
    # (1, TB*N) row -> full-width unmasked store / dense writeback DMA.
    out_ref[...] = jnp.broadcast_to(r_ln, out_ref.shape)


# -----------------------------------------------------------------------------
# Wrapper
# -----------------------------------------------------------------------------
def self_attention_encoder(x, params, *, seq_block=16):
    """Batched Self_Attention_Encoder forward.

    x: (B, N, DIM) float32 (or (N, DIM) for the module's original single
    sequence interface).  Returns the same leading shape with DIM last.
    """
    squeeze = (x.ndim == 2)
    if squeeze:
        x = x[None]
    B, N, d = x.shape
    assert d == DIM
    seq_block = min(seq_block, B)
    assert B % seq_block == 0, "batch must be divisible by seq_block"
    G = B // seq_block

    # Fused operands: one Q|K|V weight/bias slab, the W weight row, one fc
    # slab (w1 row | b1 | w2 row), and the four true scalars packed for SMEM.
    qkvp = jnp.stack([
        jnp.concatenate([params["wq"][:, 0], params["wk"][:, 0], params["wv"][:, 0]]),
        jnp.concatenate([params["bq"], params["bk"], params["bv"]]),
    ])                                                                      # (2, 48)
    wrow = params["w"]                                                      # (1, 16)
    fcp = jnp.stack([params["w1"][:, 0], params["b1"], params["w2"][0, :]])  # (3, 128)
    scalars = jnp.stack([params["bw"][0], params["ln_g"][0],
                         params["ln_b"][0], params["b2"][0]])               # (4,)

    out = pl.pallas_call(
        encoder_kernel,
        out_shape=jax.ShapeDtypeStruct((1, B * N), jnp.float32),
        grid=(G,),
        in_specs=[
            pl.BlockSpec((seq_block, N, DIM), lambda g: (g, 0, 0)),   # x slab
            pl.BlockSpec((2, 3 * EMB), lambda g: (0, 0)),             # fused QKV w|b
            pl.BlockSpec((1, EMB), lambda g: (0, 0)),                 # W weight row
            pl.BlockSpec((3, FC), lambda g: (0, 0)),                  # fc w1|b1|w2
            pl.BlockSpec(memory_space=pltpu.MemorySpace.SMEM),        # scalars
        ],
        # lane-dense output: each step owns a contiguous (1, seq_block*N) row.
        out_specs=pl.BlockSpec((1, seq_block * N), lambda g: (0, g)),
        compiler_params=pltpu.CompilerParams(
            dimension_semantics=("parallel",)),   # v7x: shard slabs over both TCs
    )(x, qkvp, wrow, fcp, scalars)

    out = out.reshape(B, N, DIM)
    return out[0] if squeeze else out


# -----------------------------------------------------------------------------
# Parameters + pure-JAX reference (general LayerNorm, validates the collapse)
# -----------------------------------------------------------------------------
def init_params(key):
    ks = jax.random.split(key, 14)

    def linear(kw, kb, fan_in, fan_out):
        bound = 1.0 / math.sqrt(fan_in)
        w = jax.random.uniform(kw, (fan_out, fan_in), jnp.float32, -bound, bound)
        b = jax.random.uniform(kb, (fan_out,), jnp.float32, -bound, bound)
        return w, b

    wq, bq = linear(ks[0], ks[1], DIM, EMB)
    wk, bk = linear(ks[2], ks[3], DIM, EMB)
    wv, bv = linear(ks[4], ks[5], DIM, EMB)
    w, bw = linear(ks[6], ks[7], EMB, DIM)
    w1, b1 = linear(ks[8], ks[9], DIM, FC)
    w2, b2 = linear(ks[10], ks[11], FC, DIM)
    # Non-default LayerNorm affine so the numerical check is non-trivial
    # (PyTorch default weight=1 / bias=0 would make the output all zeros).
    ln_g = jax.random.normal(ks[12], (DIM,), jnp.float32)
    ln_b = jax.random.normal(ks[13], (DIM,), jnp.float32)
    return dict(wq=wq, bq=bq, wk=wk, bk=bk, wv=wv, bv=bv, w=w, bw=bw,
                w1=w1, b1=b1, w2=w2, b2=b2, ln_g=ln_g, ln_b=ln_b)


def _layernorm_ref(x, gamma, beta):
    mean = jnp.mean(x, axis=-1, keepdims=True)
    var = jnp.mean((x - mean) ** 2, axis=-1, keepdims=True)
    return (x - mean) * lax.rsqrt(var + LN_EPS) * gamma + beta


def reference_single(x, p):
    """Pure-JAX mirror of the PyTorch forward for one (N, DIM) sequence,
    including the index-shadow bug, with LayerNorm computed the general way."""
    n = x.shape[0]
    q = x @ p["wq"].T + p["bq"]
    k = x @ p["wk"].T + p["bk"]
    v = x @ p["wv"].T + p["bv"]
    scores = (k @ q[n - 1]) / math.sqrt(EMB)               # query of row n-1
    pw = jax.nn.softmax(scores)
    val = pw @ v
    header = jnp.zeros((n, EMB), jnp.float32).at[n - 1].set(val)
    z = header @ p["w"].T + p["bw"] + x
    z = _layernorm_ref(z, p["ln_g"], p["ln_b"])
    r = jax.nn.sigmoid(z @ p["w1"].T + p["b1"]) @ p["w2"].T + p["b2"] + z
    return _layernorm_ref(r, p["ln_g"], p["ln_b"])


if __name__ == "__main__":
    key = jax.random.PRNGKey(0)
    kx, kp = jax.random.split(key)
    B, N = 32, 8
    params = init_params(kp)
    x = jax.random.normal(kx, (B, N, DIM), jnp.float32)

    # Batched path: 32 sequences -> 2 parallel grid slabs of 16.
    out = jax.block_until_ready(self_attention_encoder(x, params, seq_block=16))
    ref = jax.vmap(lambda xs: reference_single(xs, params))(x)
    np.testing.assert_allclose(np.asarray(out), np.asarray(ref), atol=1e-6, rtol=1e-6)
    assert out.shape == (B, N, DIM)

    # Single-sequence path (the module's original (N, dim) interface).
    out1 = jax.block_until_ready(self_attention_encoder(x[0], params))
    ref1 = reference_single(x[0], params)
    np.testing.assert_allclose(np.asarray(out1), np.asarray(ref1), atol=1e-6, rtol=1e-6)
    assert out1.shape == (N, DIM)

    print("KERNEL_OK")
</pallas_src>

<mosaic_0001>
module attributes {stable_mosaic.version = 11 : i64} {
  func.func @encoder_kernel(%arg0: i32, %arg1: memref<16x8x1xf32, #tpu.memory_space<vmem>>, %arg2: memref<2x48xf32, #tpu.memory_space<vmem>>, %arg3: memref<1x16xf32, #tpu.memory_space<vmem>>, %arg4: memref<3x128xf32, #tpu.memory_space<vmem>>, %arg5: memref<4xf32, #tpu.memory_space<smem>>, %arg6: memref<1x128xf32, #tpu.memory_space<vmem>>) attributes {dimension_semantics = [#tpu.dimension_semantics<parallel>], iteration_bounds = array<i64: 2>, scalar_prefetch = 0 : i64, scratch_operands = 0 : i64, tpu.core_type = #tpu.core_type<tc>, window_params = [{transform_indices = @transform_0, window_bounds = array<i64: 16, 8, 1>}, {pipeline_mode = #tpu.pipeline_mode<synchronous>, transform_indices = @transform_1, window_bounds = array<i64: 2, 48>}, {pipeline_mode = #tpu.pipeline_mode<synchronous>, transform_indices = @transform_2, window_bounds = array<i64: 1, 16>}, {pipeline_mode = #tpu.pipeline_mode<synchronous>, transform_indices = @transform_3, window_bounds = array<i64: 3, 128>}, {transform_indices = @transform_4, window_bounds = array<i64: 4>}, {transform_indices = @transform_5, window_bounds = array<i64: 1, 128>}]} {
    %c2 = arith.constant 2 : index
    %0 = memref.load %arg5[%c2] : memref<4xf32, #tpu.memory_space<smem>>
    %cst = arith.constant 0.000000e+00 : f32
    %1 = vector.broadcast %cst : f32 to vector<1x1xf32>
    %2 = vector.broadcast %0 : f32 to vector<1x1xf32>
    %3 = arith.addf %1, %2 : vector<1x1xf32>
    %4 = vector.shape_cast %3 : vector<1x1xf32> to vector<1x1xf32>
    %5 = vector.broadcast %4 : vector<1x1xf32> to vector<1x128xf32>
    %c0 = arith.constant 0 : index
    %c0_0 = arith.constant 0 : index
    %6 = vector.load %arg6[%c0, %c0_0] : memref<1x128xf32, #tpu.memory_space<vmem>>, vector<1x128xf32>
    tpu.vector_store %arg6[%c0, %c0_0], %5 {strides = array<i32>} : memref<1x128xf32, #tpu.memory_space<vmem>>, vector<1x128xf32>,
    return
  }
  func.func @transform_0(%arg0: i32) -> (i32, i32, i32) {
    %c0_i32 = arith.constant 0 : i32
    %c0_i32_0 = arith.constant 0 : i32
    %c0_i32_1 = arith.constant 0 : i32
    return %arg0, %c0_i32, %c0_i32_0 : i32, i32, i32
  }
  func.func @transform_1(%arg0: i32) -> (i32, i32) {
    %c0_i32 = arith.constant 0 : i32
    %c0_i32_0 = arith.constant 0 : i32
    %c0_i32_1 = arith.constant 0 : i32
    return %c0_i32, %c0_i32_0 : i32, i32
  }
  func.func @transform_2(%arg0: i32) -> (i32, i32) {
    %c0_i32 = arith.constant 0 : i32
    %c0_i32_0 = arith.constant 0 : i32
    %c0_i32_1 = arith.constant 0 : i32
    return %c0_i32, %c0_i32_0 : i32, i32
  }
  func.func @transform_3(%arg0: i32) -> (i32, i32) {
    %c0_i32 = arith.constant 0 : i32
    %c0_i32_0 = arith.constant 0 : i32
    %c0_i32_1 = arith.constant 0 : i32
    return %c0_i32, %c0_i32_0 : i32, i32
  }
  func.func @transform_4(%arg0: i32) -> i32 {
    %c0_i32 = arith.constant 0 : i32
    %c0_i32_0 = arith.constant 0 : i32
    return %c0_i32 : i32
  }
  func.func @transform_5(%arg0: i32) -> (i32, i32) {
    %c0_i32 = arith.constant 0 : i32
    %c0_i32_0 = arith.constant 0 : i32
    return %c0_i32, %arg0 : i32, i32
  }
}

</mosaic_0001>

<llo_original>
// kernel: tpu_custom_call.1
$region0: #{tpu_custom_call.1}
  #allocation0 [shape = 'u32[]', space=smem, size = 0x4, offset = 0x4, fixed_abs, tag = 'smem constant byte address 0x4 - core index']
  #allocation1 [shape = 'u32[144,128]{1,0:T(1,128)}', space=vmem, size = 0x12000, scoped, tag = 'internal scratch']
  %s0 = inlined_call_operand.vmem [shape: f32[32,8,1], index: 0, kind: input, shape index: {}]
  %s1 = inlined_call_operand.vmem [shape: f32[2,48], index: 1, kind: input, shape index: {}]
  %s2 = inlined_call_operand.vmem [shape: f32[1,16], index: 2, kind: input, shape index: {}]
  %s3 = inlined_call_operand.vmem [shape: f32[3,128], index: 3, kind: input, shape index: {}]
  %s4 = inlined_call_operand.vmem [shape: f32[4], index: 4, kind: input, shape index: {}]
  %s5 = inlined_call_operand.hbm [shape: f32[1,256], index: 5, kind: output, shape index: {}]
  %s6 = sld [smem:[#allocation0]]
  $region57: #{tpu_custom_call.1} parent=0
    _
  %s8 = ssub.s32 1, %s6
  %s9 = scalar_select 0, %s8, %s6
  $region1: #{tpu_custom_call.1} parent=0
    #allocation2 [shape = 'u8[512]{0}', space=smem, size = 0x200, scoped, tag = 'input window, operand 4, single buffered']
    #allocation3 [shape = 's32[2]{0}', space=sflag, size = 0x8, scoped, tag = 'scoped memory for tpu_custom_call.1']
    #allocation4 [shape = 's32[2]{0}', space=sflag, size = 0x8, scoped, tag = 'scoped memory for tpu_custom_call.1']
    #allocation5 [shape = 'u8[1024]{0}', space=vmem, size = 0x400, scoped, tag = 'output window, operand 0']
    %10 = vsyncpa [#allocation4], 0
    %11 = vsyncpa [#allocation3], 0
    %s12 = scalar_lea.sflag [#allocation3], 1
    %13 = vsyncpa %s12, 0
    loop: start=0, step=1, limit=4
    $region2: #{tpu_custom_call.1} parent=1 // loop_pre_header
      _
    $region3: #{tpu_custom_call.1} parent=1 // loop_header
      %s15 = sphi 0, %s19
      %p16 = scmp.ge.s32.totalorder %s15, 4
      %s25 = sphi 0, %s27
      %s28 = sphi 0, %s25
      %s29 = sphi 0, %s28
      %s45 = sphi 0, %s29
      %s49 = sphi 0, %s49
      %s51 = sphi 0, %s49
      %s52 = sphi 0, %s51
      %s66 = sphi 0, %s52
      %s70 = sphi 0, %s70
      %s72 = sphi 0, %s70
      %s73 = sphi 0, %s72
      %s87 = sphi 0, %s73
      %s91 = sphi 0, %s91
      %s93 = sphi 0, %s91
      %s94 = sphi 0, %s93
      %s108 = sphi 0, %s94
      %s112 = sphi 0, %s112
      %s114 = sphi 0, %s112
      %s115 = sphi 0, %s114
      %s129 = sphi 0, %s115
      %s135 = sphi 0, %s137
      %s138 = sphi 0, %s135
      %s139 = sphi 0, %s138
      %s155 = sphi 0, %s139
    $region4: #{tpu_custom_call.1} parent=1 // loop_header_branch
      %18 = sbr.rel (%p16) target = $region8
    $region5: #{tpu_custom_call.1} parent=1 // loop_body
      %s20 = ssub.s32 %s15, 1
      %s21 = ssub.s32 %s15, 2
      %s22 = sadd.s32 %s15, 1
      %s23 = ssub.s32 %s15, %s22
      %p24 = scmp.eq.s32.totalorder %s23, 0
      %s26 = sadd.s32 %s25, 1
      %s27 = scalar_select %p24, %s25, %s26
      %p30 = pneg %p24
      %p31 = scmp.eq.s32.totalorder %s15, 1
      %p32 = por %p30, %p31
      %p33 = scmp.ne.s32.totalorder %s25, %s28
      %p34 = scmp.eq.s32.totalorder %s15, 0
      %p35 = por %p33, %p34
      %p36 = scmp.ne.s32.totalorder %s25, %s28
      %p37 = scmp.eq.s32.totalorder %s20, 1
      %p38 = por %p36, %p37
      %p39 = scmp.ne.s32.totalorder %s28, %s29
      %p40 = scmp.eq.s32.totalorder %s20, 0
      %p41 = por %p39, %p40
      %p42 = scmp.ne.s32.totalorder %s28, %s29
      %p43 = scmp.eq.s32.totalorder %s21, 1
      %p44 = por %p42, %p43
      %p46 = scmp.ne.s32.totalorder %s29, %s45
      %p47 = scmp.eq.s32.totalorder %s21, 0
      %p48 = por %p46, %p47
      %s50 = sadd.s32 %s49, 1
      %p53 = scmp.eq.s32.totalorder %s15, 1
      %p54 = scmp.ne.s32.totalorder %s49, %s51
      %p55 = scmp.eq.s32.totalorder %s15, 0
      %p56 = por %p54, %p55
      %p57 = scmp.ne.s32.totalorder %s49, %s51
      %p58 = scmp.eq.s32.totalorder %s20, 1
      %p59 = por %p57, %p58
      %p60 = scmp.ne.s32.totalorder %s51, %s52
      %p61 = scmp.eq.s32.totalorder %s20, 0
      %p62 = por %p60, %p61
      %p63 = scmp.ne.s32.totalorder %s51, %s52
      %p64 = scmp.eq.s32.totalorder %s21, 1
      %p65 = por %p63, %p64
      %p67 = scmp.ne.s32.totalorder %s52, %s66
      %p68 = scmp.eq.s32.totalorder %s21, 0
      %p69 = por %p67, %p68
      %s71 = sadd.s32 %s70, 1
      %p74 = scmp.eq.s32.totalorder %s15, 1
      %p75 = scmp.ne.s32.totalorder %s70, %s72
      %p76 = scmp.eq.s32.totalorder %s15, 0
      %p77 = por %p75, %p76
      %p78 = scmp.ne.s32.totalorder %s70, %s72
      %p79 = scmp.eq.s32.totalorder %s20, 1
      %p80 = por %p78, %p79
      %p81 = scmp.ne.s32.totalorder %s72, %s73
      %p82 = scmp.eq.s32.totalorder %s20, 0
      %p83 = por %p81, %p82
      %p84 = scmp.ne.s32.totalorder %s72, %s73
      %p85 = scmp.eq.s32.totalorder %s21, 1
      %p86 = por %p84, %p85
      %p88 = scmp.ne.s32.totalorder %s73, %s87
      %p89 = scmp.eq.s32.totalorder %s21, 0
      %p90 = por %p88, %p89
      %s92 = sadd.s32 %s91, 1
      %p95 = scmp.eq.s32.totalorder %s15, 1
      %p96 = scmp.ne.s32.totalorder %s91, %s93
      %p97 = scmp.eq.s32.totalorder %s15, 0
      %p98 = por %p96, %p97
      %p99 = scmp.ne.s32.totalorder %s91, %s93
      %p100 = scmp.eq.s32.totalorder %s20, 1
      %p101 = por %p99, %p100
      %p102 = scmp.ne.s32.totalorder %s93, %s94
      %p103 = scmp.eq.s32.totalorder %s20, 0
      %p104 = por %p102, %p103
      %p105 = scmp.ne.s32.totalorder %s93, %s94
      %p106 = scmp.eq.s32.totalorder %s21, 1
      %p107 = por %p105, %p106
      %p109 = scmp.ne.s32.totalorder %s94, %s108
      %p110 = scmp.eq.s32.totalorder %s21, 0
      %p111 = por %p109, %p110
      %s113 = sadd.s32 %s112, 1
      %p116 = scmp.eq.s32.totalorder %s15, 1
      %p117 = scmp.ne.s32.totalorder %s112, %s114
      %p118 = scmp.eq.s32.totalorder %s15, 0
      %p119 = por %p117, %p118
      %p120 = scmp.ne.s32.totalorder %s112, %s114
      %p121 = scmp.eq.s32.totalorder %s20, 1
      %p122 = por %p120, %p121
      %p123 = scmp.ne.s32.totalorder %s114, %s115
      %p124 = scmp.eq.s32.totalorder %s20, 0
      %p125 = por %p123, %p124
      %p126 = scmp.ne.s32.totalorder %s114, %s115
      %p127 = scmp.eq.s32.totalorder %s21, 1
      %p128 = por %p126, %p127
      %p130 = scmp.ne.s32.totalorder %s115, %s129
      %p131 = scmp.eq.s32.totalorder %s21, 0
      %p132 = por %p130, %p131
      %s133 = ssub.s32 %s15, %s22
      %p134 = scmp.eq.s32.totalorder %s133, 0
      %s136 = sadd.s32 %s135, 1
      %s137 = scalar_select %p134, %s135, %s136
      %p140 = pneg %p134
      %p141 = scmp.eq.s32.totalorder %s15, 1
      %p142 = por %p140, %p141
      %p143 = scmp.ne.s32.totalorder %s135, %s138
      %p144 = scmp.eq.s32.totalorder %s15, 0
      %p145 = por %p143, %p144
      %p146 = scmp.ne.s32.totalorder %s135, %s138
      %p147 = scmp.eq.s32.totalorder %s20, 1
      %p148 = por %p146, %p147
      %p149 = scmp.ne.s32.totalorder %s138, %s139
      %p150 = scmp.eq.s32.totalorder %s20, 0
      %p151 = por %p149, %p150
      %p152 = scmp.ne.s32.totalorder %s138, %s139
      %p153 = scmp.eq.s32.totalorder %s21, 1
      %p154 = por %p152, %p153
      %p156 = scmp.ne.s32.totalorder %s139, %s155
      %p157 = scmp.eq.s32.totalorder %s21, 0
      %p158 = por %p156, %p157
      %p159 = scmp.le.s32.totalorder 1, %s15
      %p160 = scmp.lt.s32.totalorder %s15, 3
      %p161 = pnand %p159, %p160
      %p162 = pneg %p161
      // Predicated region
      $region9: #{tpu_custom_call.1} parent=5 // pred_check
        _
      $region10: #{tpu_custom_call.1} parent=5 // pred_check_branch
        %164 = sbr.rel (%p161) target = $region12
      $region11: #{tpu_custom_call.1} parent=5 // pred_region
        %s165 = ssub.s32 %s15, 1
        // Predicated region
        $region13: #{tpu_custom_call.1} parent=11 // pred_check
          %p166 = pneg %p62
        $region14: #{tpu_custom_call.1} parent=11 // pred_check_branch
          %168 = sbr.rel (%p166) target = $region16
        $region15: #{tpu_custom_call.1} parent=11 // pred_region
          _
        $region16: #{tpu_custom_call.1} parent=11 // pred_fallthru
          _
        // Predicated region
        $region17: #{tpu_custom_call.1} parent=11 // pred_check
          %p169 = pneg %p83
        $region18: #{tpu_custom_call.1} parent=11 // pred_check_branch
          %171 = sbr.rel (%p169) target = $region20
        $region19: #{tpu_custom_call.1} parent=11 // pred_region
          _
        $region20: #{tpu_custom_call.1} parent=11 // pred_fallthru
          _
        // Predicated region
        $region21: #{tpu_custom_call.1} parent=11 // pred_check
          %p172 = pneg %p104
        $region22: #{tpu_custom_call.1} parent=11 // pred_check_branch
          %174 = sbr.rel (%p172) target = $region24
        $region23: #{tpu_custom_call.1} parent=11 // pred_region
          _
        $region24: #{tpu_custom_call.1} parent=11 // pred_fallthru
          _
        // Predicated region
        $region25: #{tpu_custom_call.1} parent=11 // pred_check
          %p175 = pneg %p125
        $region26: #{tpu_custom_call.1} parent=11 // pred_check_branch
          %177 = sbr.rel (%p175) target = $region28
        $region27: #{tpu_custom_call.1} parent=11 // pred_region
          %s179 = ssub.s32 16, 16
          %180 = vsyncadd [#allocation4], %s179
          %s182 = sshll.u32 %s4, 4
          %s183 = int_to_ptr.vmem [resolvable:$true] %s182
          %185 = dma.vmem_to_smem %s183, 16, [#allocation2], [#allocation4]
        $region28: #{tpu_custom_call.1} parent=11 // pred_fallthru
          _
      $region12: #{tpu_custom_call.1} parent=5 // pred_fallthru
        _
      %p186 = scmp.lt.s32.totalorder %s15, 2
      // Predicated region
      $region29: #{tpu_custom_call.1} parent=5 // pred_check
        %p187 = pneg %p186
      $region30: #{tpu_custom_call.1} parent=5 // pred_check_branch
        %189 = sbr.rel (%p187) target = $region32
      $region31: #{tpu_custom_call.1} parent=5 // pred_region
        // Predicated region
        $region33: #{tpu_custom_call.1} parent=31 // pred_check
          %p190 = pneg %p35
        $region34: #{tpu_custom_call.1} parent=31 // pred_check_branch
          %192 = sbr.rel (%p190) target = $region36
        $region35: #{tpu_custom_call.1} parent=31 // pred_region
          %s193 = smul.u32 16, %s15
          %p194 = scmp.lt.s32.totalorder %s193, 31
          %s195 = scalar_select %p194, %s193, 31
          %s196 = smul.addr %s195, 8
          %s197 = scalar_lea.vmem %s0, %s196
          %s198 = smul.u32 16, %s15
        $region36: #{tpu_custom_call.1} parent=31 // pred_fallthru
          _
      $region32: #{tpu_custom_call.1} parent=5 // pred_fallthru
        _
      %p199 = scmp.le.s32.totalorder 1, %s15
      %p200 = scmp.lt.s32.totalorder %s15, 3
      %p201 = pnand %p199, %p200
      %p202 = pneg %p201
      // Predicated region
      $region37: #{tpu_custom_call.1} parent=5 // pred_check
        _
      $region38: #{tpu_custom_call.1} parent=5 // pred_check_branch
        %204 = sbr.rel (%p201) target = $region40
      $region39: #{tpu_custom_call.1} parent=5 // pred_region
        %s205 = ssub.s32 %s15, 1
        // Predicated region
        $region41: #{tpu_custom_call.1} parent=39 // pred_check
          %p206 = pneg %p125
        $region42: #{tpu_custom_call.1} parent=39 // pred_check_branch
          %208 = sbr.rel (%p206) target = $region44
        $region43: #{tpu_custom_call.1} parent=39 // pred_region
          %209 = dma.done [#allocation4], 16
        $region44: #{tpu_custom_call.1} parent=39 // pred_fallthru
          _
        %210 = sfence
        %s211 = smul.u32 16, %s20
        %p212 = scmp.lt.s32.totalorder %s211, 31
        %s213 = scalar_select %p212, %s211, 31
        %s214 = smul.addr %s213, 8
        %s215 = scalar_lea.vmem %s0, %s214
        %p216 = pneg %p41
        %p217 = pneg %p38
        %p218 = pneg %p62
        %p219 = pneg %p59
        %p220 = pneg %p83
        %p221 = pneg %p80
        %p222 = pneg %p104
        %p223 = pneg %p101
        %p224 = pneg %p125
        %p225 = pneg %p122
        %p226 = pneg %p151
        %p227 = pneg %p148
        %s228 = sand.u32 %s138, 1
        %s229 = scalar_lea.sflag [#allocation3], %s228
        %s230 = sand.u32 %s138, 1
        %s231 = scalar_lea.vmem [#allocation5], %s230
        %s232 = smul.u32 16, %s20
        %p233 = scmp.lt.s32.totalorder %s232, 31
        %s234 = scalar_select %p233, %s232, 31
        %s235 = smul.addr %s234, 8
        %s236 = scalar_lea.vmem %s0, %s235
        %s237 = smul.u32 16, %s20
        %s238 = sld [smem:[#allocation2 + $0x2]]
        %v239 = vstv %s238
        %v240 = vadd.f32 %v239, 0.0
        %241 = vst [vmem:[%s231] sm:$0x1] %v240
        %s242 = sand.u32 %s138, 1
        %s243 = scalar_lea.sflag [#allocation3], %s242
        %s244 = sand.u32 %s138, 1
        %s245 = scalar_lea.vmem [#allocation5], %s244
        // Predicated region
        $region45: #{tpu_custom_call.1} parent=39 // pred_check
          %p246 = pneg %p148
        $region46: #{tpu_custom_call.1} parent=39 // pred_check_branch
          %248 = sbr.rel (%p246) target = $region48
        $region47: #{tpu_custom_call.1} parent=39 // pred_region
          %s250 = ssub.s32 16, 16
          %251 = vsyncadd %s243, %s250
          %s252 = smul.addr %s20, 16
          %s253 = scalar_lea.hbm %s5, %s252
          %s255 = sshll.u32 %s245, 4
          %s256 = int_to_ptr.vmem [resolvable:$true] %s255
          %258 = dma.vmem_to_hbm [thread:$0]  %s256, 16, %s253, %s243
        $region48: #{tpu_custom_call.1} parent=39 // pred_fallthru
          _
      $region40: #{tpu_custom_call.1} parent=5 // pred_fallthru
        _
      %p259 = scmp.le.s32.totalorder 2, %s15
      // Predicated region
      $region49: #{tpu_custom_call.1} parent=5 // pred_check
        %p260 = pneg %p259
      $region50: #{tpu_custom_call.1} parent=5 // pred_check_branch
        %262 = sbr.rel (%p260) target = $region52
      $region51: #{tpu_custom_call.1} parent=5 // pred_region
        %s263 = ssub.s32 %s15, 2
        // Predicated region
        $region53: #{tpu_custom_call.1} parent=51 // pred_check
          %p264 = pneg %p154
        $region54: #{tpu_custom_call.1} parent=51 // pred_check_branch
          %266 = sbr.rel (%p264) target = $region56
        $region55: #{tpu_custom_call.1} parent=51 // pred_region
          %s267 = sand.u32 %s139, 1
          %s268 = scalar_lea.sflag [#allocation3], %s267
          %s269 = sand.u32 %s139, 1
          %s270 = scalar_lea.vmem [#allocation5], %s269
          %271 = dma.done %s268, 16
        $region56: #{tpu_custom_call.1} parent=51 // pred_fallthru
          _
      $region52: #{tpu_custom_call.1} parent=5 // pred_fallthru
        _
    $region6: #{tpu_custom_call.1} parent=1 // loop_footer
      %s19 = sadd.s32 1, %s15
    $region7: #{tpu_custom_call.1} parent=1 // loop_footer_branch
      %14 = sbr.rel target = $region3
    $region8: #{tpu_custom_call.1} parent=1 // loop_exit
      _
    %272 = vsyncpa [#allocation3], 1
    %s273 = scalar_lea.sflag [#allocation3], 1
    %274 = vsyncpa %s273, 1
    %275 = vsyncpa [#allocation4], 1
    %s276 = scalar_lea.sflag [#allocation4], 1
    %277 = vsyncpa %s276, 1

</llo_original>
